<compile_context>
chip_gen: v7x
topology: tpu7x:2x2x1
jax: 0.10.0
libtpu: 0.0.40
codegen_flags: <defaults>
</compile_context>

<pallas_src>
import functools

import jax
import jax.numpy as jnp
from jax.experimental import pallas as pl
from jax.experimental.pallas import tpu as pltpu


# ----------------------------------------------------------------------------
# VMEM sizing helpers
# ----------------------------------------------------------------------------
def _round_up(x, m):
    return ((x + m - 1) // m) * m


def _vmem_capacity_bytes():
    try:
        return int(pltpu.get_tpu_info().vmem_capacity_bytes)
    except Exception:
        return 64 * 1024 * 1024            # conservative (v7x-sized) default


def _vmem_budget_and_limit():
    cap = _vmem_capacity_bytes()
    if cap >= 100 * 1024 * 1024:           # 128 MiB parts (v5e / v6e)
        return 32 << 20, 48 << 20
    return 16 << 20, 36 << 20              # 64 MiB parts (v7x)


def _choose_row_tile(rows, *, per_row_bytes, fixed_bytes, budget_bytes,
                     max_tile_rows=None):
    """Biggest row tile that fits the VMEM budget (counting the in-kernel fp32
    working set and resident weights), capped at 1024 rows, and guaranteeing
    >= 2 grid steps when possible so both v7x TensorCores get work."""
    avail = max(budget_bytes - fixed_bytes, 8 * per_row_bytes)
    cap = max(8, avail // max(per_row_bytes, 1))
    cap = min(cap, 1024)                   # roofline plateaus by ~512 rows
    if max_tile_rows is not None:
        cap = min(cap, max(8, int(max_tile_rows)))
    cap = max(8, (cap // 8) * 8)
    rows8 = _round_up(rows, 8)
    if rows8 <= 8:
        return 8
    n_tiles = max(2, pl.cdiv(rows8, cap))  # >= 2 steps for megacore
    return max(8, min(cap, _round_up(pl.cdiv(rows8, n_tiles), 8)))


# ----------------------------------------------------------------------------
# Pallas kernels
# ----------------------------------------------------------------------------
def _rmsnorm_gated_kernel(x_ref, g_ref, w_ref, o_ref, *, eps):
    # x_ref, g_ref, o_ref: (tm, D) tiles; w_ref: (1, D)
    x = x_ref[...].astype(jnp.float32)
    g = g_ref[...].astype(jnp.float32)
    x = x * (g * jax.nn.sigmoid(g))                         # silu(gate)
    var = jnp.mean(x * x, axis=-1, keepdims=True)           # mean over emb_dim
    x = x * jax.lax.rsqrt(var + eps)
    x = x.astype(x_ref.dtype)                               # torch .to(input_dtype)
    o_ref[...] = (w_ref[...].astype(jnp.float32)
                  * x.astype(jnp.float32)).astype(o_ref.dtype)


def _rmsnorm_kernel(x_ref, w_ref, o_ref, *, eps):
    x = x_ref[...].astype(jnp.float32)
    var = jnp.mean(x * x, axis=-1, keepdims=True)
    x = x * jax.lax.rsqrt(var + eps)
    x = x.astype(x_ref.dtype)
    o_ref[...] = (w_ref[...].astype(jnp.float32)
                  * x.astype(jnp.float32)).astype(o_ref.dtype)


def _rmsnorm_gated_out_proj_kernel(x_ref, g_ref, w_ref, wo_ref, o_ref, *, eps):
    # Fused RMSNormGated + out_proj GEMM; wo_ref (D, E) stays resident in VMEM.
    x = x_ref[...].astype(jnp.float32)
    g = g_ref[...].astype(jnp.float32)
    x = x * (g * jax.nn.sigmoid(g))
    var = jnp.mean(x * x, axis=-1, keepdims=True)
    x = x * jax.lax.rsqrt(var + eps)
    x = x.astype(x_ref.dtype)
    y = w_ref[...].astype(jnp.float32) * x.astype(jnp.float32)   # (tm, D)
    o_ref[...] = jnp.dot(y, wo_ref[...].astype(jnp.float32),
                         preferred_element_type=jnp.float32).astype(o_ref.dtype)


# ----------------------------------------------------------------------------
# Pallas wrappers
# ----------------------------------------------------------------------------
def rmsnorm_gated(hidden_states, weight, gate=None, *, eps=1e-6,
                  out_dtype=None, max_tile_rows=None):
    """Matches torch RMSNormGated.forward; any row count (ragged last block),
    math in fp32 inside the kernel."""
    orig_shape = hidden_states.shape
    D = orig_shape[-1]
    x2d = hidden_states.reshape(-1, D)
    rows = x2d.shape[0]
    if out_dtype is None:
        out_dtype = jnp.result_type(weight.dtype, hidden_states.dtype)

    budget, vmem_limit = _vmem_budget_and_limit()
    n_in = 2 if gate is not None else 1
    in_isz = jnp.dtype(hidden_states.dtype).itemsize
    out_isz = jnp.dtype(out_dtype).itemsize
    # double-buffered row inputs + output, plus fp32 in-kernel temporaries
    per_row = 2 * n_in * D * in_isz + 2 * D * out_isz + (n_in + 1) * D * 4
    fixed = 2 * D * 4
    tm = _choose_row_tile(rows, per_row_bytes=per_row, fixed_bytes=fixed,
                          budget_bytes=budget, max_tile_rows=max_tile_rows)

    grid = (pl.cdiv(rows, tm),)                    # ragged last block; no pad
    row_spec = pl.BlockSpec((tm, D), lambda i: (i, 0))   # D full & lane-dense
    w_spec = pl.BlockSpec((1, D), lambda i: (0, 0))
    out_shape = jax.ShapeDtypeStruct((rows, D), out_dtype)
    cparams = pltpu.CompilerParams(dimension_semantics=("parallel",),
                                   vmem_limit_bytes=vmem_limit)

    w2d = weight.reshape(1, D)
    if gate is not None:
        g2d = gate.reshape(-1, D)
        out = pl.pallas_call(
            functools.partial(_rmsnorm_gated_kernel, eps=eps),
            out_shape=out_shape, grid=grid,
            in_specs=[row_spec, row_spec, w_spec], out_specs=row_spec,
            compiler_params=cparams,
        )(x2d, g2d, w2d)
    else:
        out = pl.pallas_call(
            functools.partial(_rmsnorm_kernel, eps=eps),
            out_shape=out_shape, grid=grid,
            in_specs=[row_spec, w_spec], out_specs=row_spec,
            compiler_params=cparams,
        )(x2d, w2d)
    return out.reshape(orig_shape[:-1] + (D,))


def rmsnorm_gated_out_proj(hidden_states, norm_weight, gate, out_w, out_b=None,
                           *, eps=1e-6, out_dtype=None, max_tile_rows=None):
    """Fused RMSNormGated + out_proj: out = (norm(hidden, gate)) @ out_w [+ b]."""
    orig_shape = hidden_states.shape
    D = orig_shape[-1]
    E = out_w.shape[-1]
    x2d = hidden_states.reshape(-1, D)
    g2d = gate.reshape(-1, D)
    rows = x2d.shape[0]
    if out_dtype is None:
        out_dtype = jnp.result_type(norm_weight.dtype, hidden_states.dtype,
                                    out_w.dtype)

    budget, vmem_limit = _vmem_budget_and_limit()
    in_isz = jnp.dtype(hidden_states.dtype).itemsize
    out_isz = jnp.dtype(out_dtype).itemsize
    wo_bytes = 2 * D * E * jnp.dtype(out_w.dtype).itemsize  # resident (x2 bufs)
    if wo_bytes > budget // 2:
        # TODO(synk): N-tile out_proj_w for very large projections; for now
        # fall back to the unfused norm + XLA GEMM.
        y = rmsnorm_gated(hidden_states, norm_weight, gate, eps=eps,
                          max_tile_rows=max_tile_rows)
        out = y @ out_w
        if out_b is not None:
            out = out + out_b
        return out.astype(out_dtype)

    per_row = (2 * 2 * D * in_isz          # x, gate (double-buffered)
               + 2 * E * out_isz           # output (double-buffered)
               + 3 * D * 4 + E * 4)        # fp32 in-kernel working set
    fixed = wo_bytes + 2 * D * 4
    tm = _choose_row_tile(rows, per_row_bytes=per_row, fixed_bytes=fixed,
                          budget_bytes=budget, max_tile_rows=max_tile_rows)

    grid = (pl.cdiv(rows, tm),)
    row_spec = pl.BlockSpec((tm, D), lambda i: (i, 0))
    w_spec = pl.BlockSpec((1, D), lambda i: (0, 0))
    wo_spec = pl.BlockSpec((D, E), lambda i: (0, 0))       # fetched once
    out_spec = pl.BlockSpec((tm, E), lambda i: (i, 0))
    cparams = pltpu.CompilerParams(dimension_semantics=("parallel",),
                                   vmem_limit_bytes=vmem_limit)

    out = pl.pallas_call(
        functools.partial(_rmsnorm_gated_out_proj_kernel, eps=eps),
        out_shape=jax.ShapeDtypeStruct((rows, E), out_dtype),
        grid=grid,
        in_specs=[row_spec, row_spec, w_spec, wo_spec],
        out_specs=out_spec,
        compiler_params=cparams,
    )(x2d, g2d, norm_weight.reshape(1, D), out_w)

    if out_b is not None:
        out = out + out_b
    return out.reshape(orig_shape[:-1] + (E,)).astype(out_dtype)


def _rmsnorm_gated_ref(hidden_states, weight, gate=None, eps=1e-6):
    input_dtype = hidden_states.dtype
    x = hidden_states.astype(jnp.float32)
    if gate is not None:
        g = gate.astype(jnp.float32)
        x = x * (g * jax.nn.sigmoid(g))
    var = jnp.mean(x * x, axis=-1, keepdims=True)
    x = x * jax.lax.rsqrt(var + eps)
    return weight * x.astype(input_dtype)


# ----------------------------------------------------------------------------
# SSM forward (JAX port of the PyTorch module, calling the Pallas kernels)
# ----------------------------------------------------------------------------
def apply_mask_to_padding_states(hidden_states, attention_mask):
    # TODO(synk): the reference keeps positions where mask == 0 (unusual
    # convention); kept faithful to the torch module, untested (demo mask=None).
    if (attention_mask is not None and attention_mask.shape[1] > 1
            and attention_mask.shape[0] > 1):
        dtype = hidden_states.dtype
        hidden_states = (hidden_states
                         * (attention_mask[:, -1, :, None] == 0)).astype(dtype)
    return hidden_states


def pad_tensor_by_size(x, pad_size):
    if x.ndim == 4:
        return jnp.pad(x, ((0, 0), (0, pad_size), (0, 0), (0, 0)))
    return jnp.pad(x, ((0, 0), (0, pad_size), (0, 0)))


def reshape_into_chunks(x, pad_size, chunk_size):
    x = pad_tensor_by_size(x, pad_size)
    if x.ndim == 3:
        return x.reshape(x.shape[0], -1, chunk_size, x.shape[2])
    return x.reshape(x.shape[0], -1, chunk_size, x.shape[2], x.shape[3])


def segment_sum(x):
    T = x.shape[-1]
    xe = jnp.broadcast_to(x[..., None], (*x.shape, T))
    m1 = jnp.tril(jnp.ones((T, T), dtype=bool), k=-1)
    xe = jnp.where(m1, xe, 0.0)
    s = jnp.cumsum(xe, axis=-2)
    m0 = jnp.tril(jnp.ones((T, T), dtype=bool), k=0)
    return jnp.where(m0, s, -jnp.inf)


def causal_depthwise_conv1d(x, w, b):
    # x: (batch, seq, C); w: (C, K); b: (C,) or None
    # Equivalent to torch Conv1d(C, C, K, padding=K-1, groups=C)[..., :seq].
    B, S, C = x.shape
    K = w.shape[-1]
    xp = jnp.pad(x, ((0, 0), (K - 1, 0), (0, 0)))
    out = jnp.zeros((B, S, C), dtype=x.dtype)
    for k in range(K):
        out = out + xp[:, k:k + S, :] * w[:, k][None, None, :]
    if b is not None:
        out = out + b[None, None, :]
    return out


def _chunked_scan_einsum(Hc, Ac, Bc, Cc, n_groups):
    """MXU-friendly chunked scan.  Faithful to the torch module (elementwise
    state over n == head_dim, no cross-chunk carry); GQA group broadcast is
    expressed via the head -> (rep, group) reshape (head h <-> group h % g)."""
    b, nc, cs, h, d = Hc.shape
    g = n_groups
    rep = h // g
    hi = jax.lax.Precision.HIGHEST          # keep fp32 reference semantics

    A_perm = jnp.transpose(Ac, (0, 3, 1, 2))              # (b, h, nc, cs)
    A_cum = jnp.cumsum(A_perm, axis=-1)
    L = jnp.exp(segment_sum(A_perm))                      # (b, h, nc, cs, cs)

    H_r = Hc.reshape(b, nc, cs, rep, g, d)
    L_r = jnp.transpose(L.reshape(b, rep, g, nc, cs, cs), (0, 3, 1, 2, 4, 5))

    # Within-chunk ("diagonal") term.
    G = jnp.einsum('bcign,bcjgn->bcgij', Cc, Bc, precision=hi)   # (b,nc,g,cs,cs)
    M = G[:, :, None] * L_r                                      # (b,nc,rep,g,cs,cs)
    Yd = jnp.einsum('bcrgij,bcjrgd->bcirgd', M, H_r, precision=hi)

    # Chunk-local state / off-diagonal term (elementwise over n == d).
    decay_r = jnp.transpose(jnp.exp(A_cum[..., -1:] - A_cum),
                            (0, 2, 3, 1)).reshape(b, nc, cs, rep, g)
    Sd_r = jnp.transpose(jnp.exp(A_cum), (0, 2, 3, 1)).reshape(b, nc, cs, rep, g)
    state = jnp.einsum('bcjgn,bcjrgn->bcrgn', Bc, decay_r[..., None] * H_r,
                       precision=hi)                             # (b,nc,rep,g,n)
    Yoff = (Cc[:, :, :, None] * state[:, :, None]) * Sd_r[..., None]
    return (Yd + Yoff).reshape(b, nc, cs, h, d)


def _chunked_scan_bcast(Hc, Ac, B_c, C_c):
    """Direct broadcast-multiply-reduce port of the torch module (reference)."""
    A_perm = jnp.transpose(Ac, (0, 3, 1, 2))
    A_cum = jnp.cumsum(A_perm, axis=-1)
    L_tri = jnp.exp(segment_sum(A_perm))
    G = (C_c[:, :, :, None] * B_c[:, :, None]).sum(-1)
    M = G * jnp.transpose(L_tri, (0, 2, 3, 4, 1))
    Yd = (M[..., None] * Hc[:, :, None]).sum(3)
    decay = jnp.exp(A_cum[..., -1:] - A_cum)
    B_dec = B_c * jnp.transpose(decay, (0, 2, 3, 1))[..., None]
    state = (B_dec[..., None] * Hc[..., None]).sum(2)
    Sd_out = jnp.exp(A_cum)
    CofS = C_c[..., None] * state[:, :, None]
    Yoff = CofS.sum(-1) * jnp.transpose(Sd_out, (0, 2, 3, 1))[..., None]
    return Yd + Yoff


def init_ssm_params(key, cfg):
    emb_dim, nheads = cfg["emb_dim"], cfg["nheads"]
    intermediate = int(cfg["expand"] * emb_dim)
    conv_dim = intermediate + 2 * cfg["n_groups"] * cfg["state_size"]
    proj_size = intermediate + conv_dim + nheads
    k1, k2, k3, k4 = jax.random.split(key, 4)
    return {
        "in_proj_w": 0.05 * jax.random.normal(k1, (emb_dim, proj_size), jnp.float32),
        "in_proj_b": None,
        "conv_w": 0.2 * jax.random.normal(k2, (conv_dim, cfg["conv_kernel"]), jnp.float32),
        "conv_b": (0.1 * jax.random.normal(k3, (conv_dim,), jnp.float32)
                   if cfg["use_conv_bias"] else None),
        "dt_bias": jnp.ones((cfg["nheads"],), jnp.float32),
        "A_log": jnp.log(jnp.arange(1, nheads + 1, dtype=jnp.float32)),
        "D": jnp.ones((nheads,), jnp.float32),
        "norm_w": jnp.ones((intermediate,), jnp.float32),
        "out_proj_w": 0.05 * jax.random.normal(k4, (intermediate, emb_dim), jnp.float32),
        "out_proj_b": None,
    }


def ssm_forward(params, cfg, input_states, mask=None, *,
                use_pallas_norm=True, use_einsum_scan=True):
    # TODO(synk): in_proj / depthwise causal conv1d / chunked segment-sum scan
    # remain plain XLA (einsum) ops, not dedicated Pallas kernels.
    batch_size, seq_len, _ = input_states.shape
    nheads, head_dim = cfg["nheads"], cfg["head_dim"]
    n_groups, state_size = cfg["n_groups"], cfg["state_size"]
    chunk_size = cfg["chunk_size"]
    intermediate = int(cfg["expand"] * cfg["emb_dim"])
    conv_dim = intermediate + 2 * n_groups * state_size
    assert head_dim == state_size, "module broadcasting requires head_dim == state_size"
    assert nheads % n_groups == 0

    x = apply_mask_to_padding_states(input_states, mask)
    proj = x @ params["in_proj_w"]
    if params["in_proj_b"] is not None:
        proj = proj + params["in_proj_b"]
    gate = proj[..., :intermediate]
    h_BC = proj[..., intermediate:intermediate + conv_dim]
    dt = proj[..., intermediate + conv_dim:]

    h_BC = jax.nn.silu(causal_depthwise_conv1d(h_BC, params["conv_w"], params["conv_b"]))
    h_BC = apply_mask_to_padding_states(h_BC, mask)

    hidden = h_BC[..., :intermediate]
    B = h_BC[..., intermediate:intermediate + n_groups * state_size]
    C = h_BC[..., intermediate + n_groups * state_size:]

    A = -jnp.exp(params["A_log"].astype(jnp.float32))
    dt = jax.nn.softplus(dt + params["dt_bias"])
    dt = jnp.clip(dt, 0.0, jnp.inf)

    H = hidden.reshape(batch_size, seq_len, -1, head_dim).astype(jnp.float32)
    Bg = B.reshape(batch_size, seq_len, -1, state_size).astype(jnp.float32)
    Cg = C.reshape(batch_size, seq_len, -1, state_size).astype(jnp.float32)

    pad = (chunk_size - seq_len % chunk_size) % chunk_size
    D_resid = params["D"][:, None] * pad_tensor_by_size(H, pad)

    H = H * dt[..., None]
    A_full = A.astype(H.dtype) * dt

    Hc = reshape_into_chunks(H, pad, chunk_size)          # (b, nc, cs, h, d)
    Ac = reshape_into_chunks(A_full, pad, chunk_size)     # (b, nc, cs, h)

    if use_einsum_scan:
        Bc = reshape_into_chunks(Bg, pad, chunk_size)     # (b, nc, cs, g, n)
        Cc = reshape_into_chunks(Cg, pad, chunk_size)
        y = _chunked_scan_einsum(Hc, Ac, Bc, Cc, n_groups)
    else:
        rep = nheads // n_groups
        B_c = reshape_into_chunks(jnp.tile(Bg, (1, 1, rep, 1)), pad, chunk_size)
        C_c = reshape_into_chunks(jnp.tile(Cg, (1, 1, rep, 1)), pad, chunk_size)
        y = _chunked_scan_bcast(Hc, Ac, B_c, C_c)

    y = y.reshape(batch_size, -1, nheads, head_dim) + D_resid
    if pad:
        y = y[:, :seq_len]
    y = y.reshape(batch_size, seq_len, -1)

    if use_pallas_norm:
        out = rmsnorm_gated_out_proj(y, params["norm_w"], gate,
                                     params["out_proj_w"], params["out_proj_b"],
                                     eps=cfg["norm_eps"])
    else:
        yn = _rmsnorm_gated_ref(y, params["norm_w"], gate, eps=cfg["norm_eps"])
        out = yn @ params["out_proj_w"]
        if params["out_proj_b"] is not None:
            out = out + params["out_proj_b"]
    return out


# ----------------------------------------------------------------------------
# Demo / correctness checks
# ----------------------------------------------------------------------------
if __name__ == "__main__":
    key = jax.random.PRNGKey(0)
    keys = jax.random.split(key, 8)

    # 1) standalone gated RMSNorm, f32, ragged rows (22 rows) + forced multi-tile
    Dn = 128
    hs = jax.random.normal(keys[0], (2, 11, Dn), dtype=jnp.float32)
    gt = jax.random.normal(keys[1], (2, 11, Dn), dtype=jnp.float32)
    wn = 1.0 + 0.1 * jax.random.normal(keys[2], (Dn,), dtype=jnp.float32)
    out_r = _rmsnorm_gated_ref(hs, wn, gt, eps=1e-6)
    for mt in (None, 8):
        out_k = rmsnorm_gated(hs, wn, gt, eps=1e-6, max_tile_rows=mt)
        assert jnp.allclose(out_k, out_r, atol=1e-5, rtol=1e-5)
    out_k = rmsnorm_gated(hs, wn, None, eps=1e-6)
    assert jnp.allclose(out_k, _rmsnorm_gated_ref(hs, wn, None, eps=1e-6),
                        atol=1e-5, rtol=1e-5)

    # 2) bf16 activation path (input-dtype round trip), looser tolerance
    hs16, gt16 = hs.astype(jnp.bfloat16), gt.astype(jnp.bfloat16)
    out_k = rmsnorm_gated(hs16, wn, gt16, eps=1e-6)
    out_rb = _rmsnorm_gated_ref(hs16, wn, gt16, eps=1e-6)
    assert jnp.allclose(out_k.astype(jnp.float32), out_rb.astype(jnp.float32),
                        atol=2e-2, rtol=2e-2)

    # 3) fused norm + out_proj
    E = 64
    Wo = 0.05 * jax.random.normal(keys[3], (Dn, E), dtype=jnp.float32)
    ref_fused = _rmsnorm_gated_ref(hs, wn, gt, eps=1e-6) @ Wo
    for mt in (None, 8):
        out_k = rmsnorm_gated_out_proj(hs, wn, gt, Wo, None, eps=1e-6,
                                       max_tile_rows=mt)
        assert out_k.shape == (2, 11, E)
        assert jnp.allclose(out_k, ref_fused, atol=5e-3, rtol=5e-3)

    # 4) full SSM forward: einsum scan + fused Pallas norm/out_proj vs
    #    broadcast-reduce scan + pure-JAX reference norm.
    cfg = dict(nheads=8, emb_dim=64, state_size=16, conv_kernel=4, expand=2.0,
               use_bias=False, use_conv_bias=True, activation_fn="silu",
               norm_eps=1e-6, n_groups=2, head_dim=16, chunk_size=8)
    params = init_ssm_params(keys[4], cfg)
    input_states = jax.random.normal(keys[5], (2, 12, cfg["emb_dim"]),
                                     dtype=jnp.float32)

    out_fused = ssm_forward(params, cfg, input_states, None,
                            use_pallas_norm=True, use_einsum_scan=True)
    out_ref_es = ssm_forward(params, cfg, input_states, None,
                             use_pallas_norm=False, use_einsum_scan=True)
    out_ref = ssm_forward(params, cfg, input_states, None,
                          use_pallas_norm=False, use_einsum_scan=False)
    jax.block_until_ready((out_fused, out_ref_es, out_ref))

    assert out_fused.shape == (2, 12, cfg["emb_dim"])
    assert jnp.all(jnp.isfinite(out_fused))
    # einsum scan matches the broadcast-reduce reference scan
    assert jnp.allclose(out_ref_es, out_ref, atol=1e-3, rtol=1e-3)
    # end-to-end Pallas (fused norm + out_proj) matches the pure-JAX reference
    assert jnp.allclose(out_fused, out_ref, atol=5e-3, rtol=5e-3)

    print("KERNEL_OK")
</pallas_src>

<mosaic_0001>
module attributes {stable_mosaic.version = 11 : i64} {
  func.func @_rmsnorm_gated_kernel(%arg0: i32, %arg1: memref<16x128xf32, #tpu.memory_space<vmem>>, %arg2: memref<16x128xf32, #tpu.memory_space<vmem>>, %arg3: memref<1x128xf32, #tpu.memory_space<vmem>>, %arg4: memref<16x128xf32, #tpu.memory_space<vmem>>) attributes {dimension_semantics = [#tpu.dimension_semantics<parallel>], iteration_bounds = array<i64: 2>, scalar_prefetch = 0 : i64, scratch_operands = 0 : i64, tpu.core_type = #tpu.core_type<tc>, window_params = [{transform_indices = @transform_0, window_bounds = array<i64: 16, 128>}, {transform_indices = @transform_1, window_bounds = array<i64: 16, 128>}, {pipeline_mode = #tpu.pipeline_mode<synchronous>, transform_indices = @transform_2, window_bounds = array<i64: 1, 128>}, {transform_indices = @transform_3, window_bounds = array<i64: 16, 128>}]} {
    %c0 = arith.constant 0 : index
    %c0_0 = arith.constant 0 : index
    %0 = vector.load %arg1[%c0, %c0_0] : memref<16x128xf32, #tpu.memory_space<vmem>>, vector<16x128xf32>
    %c0_1 = arith.constant 0 : index
    %c0_2 = arith.constant 0 : index
    %1 = vector.load %arg2[%c0_1, %c0_2] : memref<16x128xf32, #tpu.memory_space<vmem>>, vector<16x128xf32>
    %2 = arith.negf %1 : vector<16x128xf32>
    %3 = math.exp %2 : vector<16x128xf32>
    %cst = arith.constant 1.000000e+00 : f32
    %4 = vector.broadcast %cst : f32 to vector<16x128xf32>
    %5 = arith.addf %4, %3 : vector<16x128xf32>
    %6 = arith.divf %4, %5 : vector<16x128xf32>
    %7 = arith.mulf %1, %6 : vector<16x128xf32>
    %8 = arith.mulf %0, %7 : vector<16x128xf32>
    %9 = arith.mulf %8, %8 : vector<16x128xf32>
    %cst_3 = arith.constant dense<0.000000e+00> : vector<16xf32>
    %10 = vector.multi_reduction <add>, %9, %cst_3 [1] : vector<16x128xf32> to vector<16xf32>
    %11 = vector.shape_cast %10 : vector<16xf32> to vector<16x1xf32>
    %cst_4 = arith.constant 1.280000e+02 : f32
    %12 = vector.broadcast %cst_4 : f32 to vector<16x1xf32>
    %13 = arith.divf %11, %12 : vector<16x1xf32>
    %cst_5 = arith.constant 9.99999997E-7 : f32
    %14 = vector.broadcast %cst_5 : f32 to vector<16x1xf32>
    %15 = arith.addf %13, %14 : vector<16x1xf32>
    %16 = math.rsqrt %15 : vector<16x1xf32>
    %17 = vector.broadcast %16 : vector<16x1xf32> to vector<16x128xf32>
    %18 = arith.mulf %8, %17 : vector<16x128xf32>
    %c0_6 = arith.constant 0 : index
    %c0_7 = arith.constant 0 : index
    %19 = vector.load %arg3[%c0_6, %c0_7] : memref<1x128xf32, #tpu.memory_space<vmem>>, vector<1x128xf32>
    %20 = vector.broadcast %19 : vector<1x128xf32> to vector<16x128xf32>
    %21 = arith.mulf %20, %18 : vector<16x128xf32>
    %c0_8 = arith.constant 0 : index
    %c0_9 = arith.constant 0 : index
    %22 = vector.load %arg4[%c0_8, %c0_9] : memref<16x128xf32, #tpu.memory_space<vmem>>, vector<16x128xf32>
    tpu.vector_store %arg4[%c0_8, %c0_9], %21 {strides = array<i32>} : memref<16x128xf32, #tpu.memory_space<vmem>>, vector<16x128xf32>,
    return
  }
  func.func @transform_0(%arg0: i32) -> (i32, i32) {
    %c0_i32 = arith.constant 0 : i32
    %c0_i32_0 = arith.constant 0 : i32
    return %arg0, %c0_i32 : i32, i32
  }
  func.func @transform_1(%arg0: i32) -> (i32, i32) {
    %c0_i32 = arith.constant 0 : i32
    %c0_i32_0 = arith.constant 0 : i32
    return %arg0, %c0_i32 : i32, i32
  }
  func.func @transform_2(%arg0: i32) -> (i32, i32) {
    %c0_i32 = arith.constant 0 : i32
    %c0_i32_0 = arith.constant 0 : i32
    %c0_i32_1 = arith.constant 0 : i32
    return %c0_i32, %c0_i32_0 : i32, i32
  }
  func.func @transform_3(%arg0: i32) -> (i32, i32) {
    %c0_i32 = arith.constant 0 : i32
    %c0_i32_0 = arith.constant 0 : i32
    return %arg0, %c0_i32 : i32, i32
  }
}

</mosaic_0001>

<llo_original>
// kernel: tpu_custom_call.1
$region0: #{tpu_custom_call.1}
  #allocation0 [shape = 'u32[]', space=smem, size = 0x4, offset = 0x4, fixed_abs, tag = 'smem constant byte address 0x4 - core index']
  #allocation1 [shape = 'u32[144,128]{1,0:T(1,128)}', space=vmem, size = 0x12000, scoped, tag = 'internal scratch']
  %s0 = inlined_call_operand.hbm [shape: f32[22,128], index: 0, kind: input, shape index: {}]
  %s1 = inlined_call_operand.hbm [shape: f32[22,128], index: 1, kind: input, shape index: {}]
  %s2 = inlined_call_operand.vmem [shape: f32[1,128], index: 2, kind: input, shape index: {}]
  %s3 = inlined_call_operand.hbm [shape: f32[22,128], index: 3, kind: output, shape index: {}]
  %s4 = sld [smem:[#allocation0]]
  $region53: #{tpu_custom_call.1} parent=0
    _
  %s6 = ssub.s32 1, %s4
  %s7 = scalar_select 0, %s6, %s4
  $region1: #{tpu_custom_call.1} parent=0
    #allocation2 [shape = 'u8[16384]{0}', space=vmem, size = 0x4000, scoped, tag = 'input window, operand 0']
    #allocation3 [shape = 's32[2]{0}', space=sflag, size = 0x8, scoped, tag = 'scoped memory for tpu_custom_call.1']
    #allocation4 [shape = 's32[2]{0}', space=sflag, size = 0x8, scoped, tag = 'scoped memory for tpu_custom_call.1']
    #allocation5 [shape = 'u8[16384]{0}', space=vmem, size = 0x4000, scoped, tag = 'input window, operand 1']
    #allocation6 [shape = 's32[2]{0}', space=sflag, size = 0x8, scoped, tag = 'scoped memory for tpu_custom_call.1']
    #allocation7 [shape = 'u8[16384]{0}', space=vmem, size = 0x4000, scoped, tag = 'output window, operand 0']
    %8 = vsyncpa [#allocation3], 0
    %s9 = scalar_lea.sflag [#allocation3], 1
    %10 = vsyncpa %s9, 0
    %11 = vsyncpa [#allocation6], 0
    %s12 = scalar_lea.sflag [#allocation6], 1
    %13 = vsyncpa %s12, 0
    %14 = vsyncpa [#allocation4], 0
    %s15 = scalar_lea.sflag [#allocation4], 1
    %16 = vsyncpa %s15, 0
    loop: start=0, step=1, limit=4
    $region2: #{tpu_custom_call.1} parent=1 // loop_pre_header
      _
    $region3: #{tpu_custom_call.1} parent=1 // loop_header
      %s18 = sphi 0, %s22
      %p19 = scmp.ge.s32.totalorder %s18, 4
      %s28 = sphi 0, %s30
      %s31 = sphi 0, %s28
      %s32 = sphi 0, %s31
      %s48 = sphi 0, %s32
      %s54 = sphi 0, %s56
      %s57 = sphi 0, %s54
      %s58 = sphi 0, %s57
      %s74 = sphi 0, %s58
      %s78 = sphi 0, %s78
      %s80 = sphi 0, %s78
      %s81 = sphi 0, %s80
      %s95 = sphi 0, %s81
      %s101 = sphi 0, %s103
      %s104 = sphi 0, %s101
      %s105 = sphi 0, %s104
      %s121 = sphi 0, %s105
    $region4: #{tpu_custom_call.1} parent=1 // loop_header_branch
      %21 = sbr.rel (%p19) target = $region8
    $region5: #{tpu_custom_call.1} parent=1 // loop_body
      %s23 = ssub.s32 %s18, 1
      %s24 = ssub.s32 %s18, 2
      %s25 = sadd.s32 %s18, 1
      %s26 = ssub.s32 %s18, %s25
      %p27 = scmp.eq.s32.totalorder %s26, 0
      %s29 = sadd.s32 %s28, 1
      %s30 = scalar_select %p27, %s28, %s29
      %p33 = pneg %p27
      %p34 = scmp.eq.s32.totalorder %s18, 1
      %p35 = por %p33, %p34
      %p36 = scmp.ne.s32.totalorder %s28, %s31
      %p37 = scmp.eq.s32.totalorder %s18, 0
      %p38 = por %p36, %p37
      %p39 = scmp.ne.s32.totalorder %s28, %s31
      %p40 = scmp.eq.s32.totalorder %s23, 1
      %p41 = por %p39, %p40
      %p42 = scmp.ne.s32.totalorder %s31, %s32
      %p43 = scmp.eq.s32.totalorder %s23, 0
      %p44 = por %p42, %p43
      %p45 = scmp.ne.s32.totalorder %s31, %s32
      %p46 = scmp.eq.s32.totalorder %s24, 1
      %p47 = por %p45, %p46
      %p49 = scmp.ne.s32.totalorder %s32, %s48
      %p50 = scmp.eq.s32.totalorder %s24, 0
      %p51 = por %p49, %p50
      %s52 = ssub.s32 %s18, %s25
      %p53 = scmp.eq.s32.totalorder %s52, 0
      %s55 = sadd.s32 %s54, 1
      %s56 = scalar_select %p53, %s54, %s55
      %p59 = pneg %p53
      %p60 = scmp.eq.s32.totalorder %s18, 1
      %p61 = por %p59, %p60
      %p62 = scmp.ne.s32.totalorder %s54, %s57
      %p63 = scmp.eq.s32.totalorder %s18, 0
      %p64 = por %p62, %p63
      %p65 = scmp.ne.s32.totalorder %s54, %s57
      %p66 = scmp.eq.s32.totalorder %s23, 1
      %p67 = por %p65, %p66
      %p68 = scmp.ne.s32.totalorder %s57, %s58
      %p69 = scmp.eq.s32.totalorder %s23, 0
      %p70 = por %p68, %p69
      %p71 = scmp.ne.s32.totalorder %s57, %s58
      %p72 = scmp.eq.s32.totalorder %s24, 1
      %p73 = por %p71, %p72
      %p75 = scmp.ne.s32.totalorder %s58, %s74
      %p76 = scmp.eq.s32.totalorder %s24, 0
      %p77 = por %p75, %p76
      %s79 = sadd.s32 %s78, 1
      %p82 = scmp.eq.s32.totalorder %s18, 1
      %p83 = scmp.ne.s32.totalorder %s78, %s80
      %p84 = scmp.eq.s32.totalorder %s18, 0
      %p85 = por %p83, %p84
      %p86 = scmp.ne.s32.totalorder %s78, %s80
      %p87 = scmp.eq.s32.totalorder %s23, 1
      %p88 = por %p86, %p87
      %p89 = scmp.ne.s32.totalorder %s80, %s81
      %p90 = scmp.eq.s32.totalorder %s23, 0
      %p91 = por %p89, %p90
      %p92 = scmp.ne.s32.totalorder %s80, %s81
      %p93 = scmp.eq.s32.totalorder %s24, 1
      %p94 = por %p92, %p93
      %p96 = scmp.ne.s32.totalorder %s81, %s95
      %p97 = scmp.eq.s32.totalorder %s24, 0
      %p98 = por %p96, %p97
      %s99 = ssub.s32 %s18, %s25
      %p100 = scmp.eq.s32.totalorder %s99, 0
      %s102 = sadd.s32 %s101, 1
      %s103 = scalar_select %p100, %s101, %s102
      %p106 = pneg %p100
      %p107 = scmp.eq.s32.totalorder %s18, 1
      %p108 = por %p106, %p107
      %p109 = scmp.ne.s32.totalorder %s101, %s104
      %p110 = scmp.eq.s32.totalorder %s18, 0
      %p111 = por %p109, %p110
      %p112 = scmp.ne.s32.totalorder %s101, %s104
      %p113 = scmp.eq.s32.totalorder %s23, 1
      %p114 = por %p112, %p113
      %p115 = scmp.ne.s32.totalorder %s104, %s105
      %p116 = scmp.eq.s32.totalorder %s23, 0
      %p117 = por %p115, %p116
      %p118 = scmp.ne.s32.totalorder %s104, %s105
      %p119 = scmp.eq.s32.totalorder %s24, 1
      %p120 = por %p118, %p119
      %p122 = scmp.ne.s32.totalorder %s105, %s121
      %p123 = scmp.eq.s32.totalorder %s24, 0
      %p124 = por %p122, %p123
      %p125 = scmp.le.s32.totalorder 1, %s18
      %p126 = scmp.lt.s32.totalorder %s18, 3
      %p127 = pnand %p125, %p126
      %p128 = pneg %p127
      // Predicated region
      $region9: #{tpu_custom_call.1} parent=5 // pred_check
        _
      $region10: #{tpu_custom_call.1} parent=5 // pred_check_branch
        %130 = sbr.rel (%p127) target = $region12
      $region11: #{tpu_custom_call.1} parent=5 // pred_region
        %s131 = ssub.s32 %s18, 1
        // Predicated region
        $region13: #{tpu_custom_call.1} parent=11 // pred_check
          %p132 = pneg %p91
        $region14: #{tpu_custom_call.1} parent=11 // pred_check_branch
          %134 = sbr.rel (%p132) target = $region16
        $region15: #{tpu_custom_call.1} parent=11 // pred_region
          _
        $region16: #{tpu_custom_call.1} parent=11 // pred_fallthru
          _
      $region12: #{tpu_custom_call.1} parent=5 // pred_fallthru
        _
      %p135 = scmp.lt.s32.totalorder %s18, 2
      // Predicated region
      $region17: #{tpu_custom_call.1} parent=5 // pred_check
        %p136 = pneg %p135
      $region18: #{tpu_custom_call.1} parent=5 // pred_check_branch
        %138 = sbr.rel (%p136) target = $region20
      $region19: #{tpu_custom_call.1} parent=5 // pred_region
        // Predicated region
        $region21: #{tpu_custom_call.1} parent=19 // pred_check
          %p139 = pneg %p38
        $region22: #{tpu_custom_call.1} parent=19 // pred_check_branch
          %141 = sbr.rel (%p139) target = $region24
        $region23: #{tpu_custom_call.1} parent=19 // pred_region
          %s142 = sand.u32 %s28, 1
          %s143 = scalar_lea.sflag [#allocation3], %s142
          %s144 = sand.u32 %s28, 1
          %s145 = smul.addr %s144, 16
          %s146 = scalar_lea.vmem [#allocation2], %s145
          %s147 = smul.u32 2, %s18
          %s148 = ssub.s32 3, %s147
          %p149 = scmp.lt.s32.totalorder %s148, 2
          %s150 = scalar_select %p149, %s148, 2
          %s151 = smul.u32 128, %s150
          %s153 = ssub.s32 256, %s151
          %154 = vsyncadd %s143, %s153
          %p155 = scmp.ne.s32.totalorder 0, %s151
          %s156 = smul.addr %s147, 128
          %s157 = scalar_lea.hbm %s0, %s156
          %s158 = smul.u32 8, %s150
          %s159 = sshll.u32 %s146, 4
          %s160 = int_to_ptr.vmem [resolvable:$true] %s159
          %s161 = sshll.u32 %s158, 4
          %165 = dma.hbm_to_vmem [thread:$0]  (%p155), %s157, %s161, %s160, %s143, 128, 128, 8
        $region24: #{tpu_custom_call.1} parent=19 // pred_fallthru
          _
        // Predicated region
        $region25: #{tpu_custom_call.1} parent=19 // pred_check
          %p166 = pneg %p64
        $region26: #{tpu_custom_call.1} parent=19 // pred_check_branch
          %168 = sbr.rel (%p166) target = $region28
        $region27: #{tpu_custom_call.1} parent=19 // pred_region
          %s169 = sand.u32 %s54, 1
          %s170 = scalar_lea.sflag [#allocation6], %s169
          %s171 = sand.u32 %s54, 1
          %s172 = smul.addr %s171, 16
          %s173 = scalar_lea.vmem [#allocation5], %s172
          %s174 = smul.u32 2, %s18
          %s175 = ssub.s32 3, %s174
          %p176 = scmp.lt.s32.totalorder %s175, 2
          %s177 = scalar_select %p176, %s175, 2
          %s178 = smul.u32 128, %s177
          %s180 = ssub.s32 256, %s178
          %181 = vsyncadd %s170, %s180
          %p182 = scmp.ne.s32.totalorder 0, %s178
          %s183 = smul.addr %s174, 128
          %s184 = scalar_lea.hbm %s1, %s183
          %s185 = smul.u32 8, %s177
          %s186 = sshll.u32 %s173, 4
          %s187 = int_to_ptr.vmem [resolvable:$true] %s186
          %s188 = sshll.u32 %s185, 4
          %192 = dma.hbm_to_vmem [thread:$0]  (%p182), %s184, %s188, %s187, %s170, 128, 128, 8
        $region28: #{tpu_custom_call.1} parent=19 // pred_fallthru
          _
      $region20: #{tpu_custom_call.1} parent=5 // pred_fallthru
        _
      %p193 = scmp.le.s32.totalorder 1, %s18
      %p194 = scmp.lt.s32.totalorder %s18, 3
      %p195 = pnand %p193, %p194
      %p196 = pneg %p195
      // Predicated region
      $region29: #{tpu_custom_call.1} parent=5 // pred_check
        _
      $region30: #{tpu_custom_call.1} parent=5 // pred_check_branch
        %198 = sbr.rel (%p195) target = $region32
      $region31: #{tpu_custom_call.1} parent=5 // pred_region
        %s199 = ssub.s32 %s18, 1
        %s200 = sand.u32 %s31, 1
        %s201 = scalar_lea.sflag [#allocation3], %s200
        %s202 = sand.u32 %s31, 1
        %s203 = smul.addr %s202, 16
        %s204 = scalar_lea.vmem [#allocation2], %s203
        // Predicated region
        $region33: #{tpu_custom_call.1} parent=31 // pred_check
          %p205 = pneg %p44
        $region34: #{tpu_custom_call.1} parent=31 // pred_check_branch
          %207 = sbr.rel (%p205) target = $region36
        $region35: #{tpu_custom_call.1} parent=31 // pred_region
          %208 = dma.done %s201, 256
        $region36: #{tpu_custom_call.1} parent=31 // pred_fallthru
          _
        %s209 = sand.u32 %s57, 1
        %s210 = scalar_lea.sflag [#allocation6], %s209
        %s211 = sand.u32 %s57, 1
        %s212 = smul.addr %s211, 16
        %s213 = scalar_lea.vmem [#allocation5], %s212
        // Predicated region
        $region37: #{tpu_custom_call.1} parent=31 // pred_check
          %p214 = pneg %p70
        $region38: #{tpu_custom_call.1} parent=31 // pred_check_branch
          %216 = sbr.rel (%p214) target = $region40
        $region39: #{tpu_custom_call.1} parent=31 // pred_region
          %217 = dma.done %s210, 256
        $region40: #{tpu_custom_call.1} parent=31 // pred_fallthru
          _
        %s218 = sand.u32 %s31, 1
        %s219 = scalar_lea.sflag [#allocation3], %s218
        %s220 = sand.u32 %s31, 1
        %s221 = smul.addr %s220, 16
        %s222 = scalar_lea.vmem [#allocation2], %s221
        %p223 = pneg %p44
        %p224 = pneg %p41
        %s225 = sand.u32 %s57, 1
        %s226 = scalar_lea.sflag [#allocation6], %s225
        %s227 = sand.u32 %s57, 1
        %s228 = smul.addr %s227, 16
        %s229 = scalar_lea.vmem [#allocation5], %s228
        %p230 = pneg %p70
        %p231 = pneg %p67
        %p232 = pneg %p91
        %p233 = pneg %p88
        %p234 = pneg %p117
        %p235 = pneg %p114
        %s236 = sand.u32 %s104, 1
        %s237 = scalar_lea.sflag [#allocation4], %s236
        %s238 = sand.u32 %s104, 1
        %s239 = smul.addr %s238, 16
        %s240 = scalar_lea.vmem [#allocation7], %s239
        %s241 = smul.u32 2, %s23
        %s242 = ssub.s32 3, %s241
        %p243 = scmp.lt.s32.totalorder %s242, 2
        %s244 = scalar_select %p243, %s242, 2
        %s245 = smul.u32 128, %s244
        %s246 = smul.u32 2, %s23
        %s247 = ssub.s32 3, %s246
        %p248 = scmp.lt.s32.totalorder %s247, 2
        %s249 = scalar_select %p248, %s247, 2
        %s250 = smul.u32 128, %s249
        %s251 = smul.u32 2, %s23
        %s252 = ssub.s32 3, %s251
        %p253 = scmp.lt.s32.totalorder %s252, 2
        %s254 = scalar_select %p253, %s252, 2
        %s255 = smul.u32 128, %s254
        %v256 = vld [vmem:[%s204] sm:$0xff]
        %v257 = vld [vmem:[%s204 + $0x8] sm:$0xff]
        %v258 = vld [vmem:[%s213] sm:$0xff]
        %v259 = vld [vmem:[%s213 + $0x8] sm:$0xff]
        %v260 = vxor.u32 %v258, 2147483648
        %v261 = vxor.u32 %v259, 2147483648
        %v262 = vmul.f32 %v260, 1.442695
        %v263 = vpow.pop %v262
        %v264 = vmul.f32 %v261, 1.442695
        %v265 = vpow.pop %v264
        %v266 = vadd.f32 %v263, 1.0
        %v267 = vadd.f32 %v265, 1.0
        %v268 = vrcp.pop %v266
        %v269 = vmul.f32 1.0, %v268
        %v270 = vrcp.pop %v267
        %v271 = vmul.f32 1.0, %v270
        %v272 = vmul.f32 %v258, %v269
        %v273 = vmul.f32 %v259, %v271
        %v274 = vmul.f32 %v256, %v272
        %v275 = vmul.f32 %v257, %v273
        %v276 = vmul.f32 %v274, %v274
        %v277 = vmul.f32 %v275, %v275
        %278 = vadd.xlane.f32.xlu0 %v276
        %v279 = vpop.xlane.xlu0 %278
        %280 = vadd.xlane.f32.xlu0 %v277
        %v281 = vpop.xlane.xlu0 %280
        %v282 = vrcp.pop 128.0
        %v283 = vmul.f32 %v279, %v282
        %v284 = vmul.f32 %v281, %v282
        %v285 = vadd.f32 %v283, 1e-06
        %v286 = vadd.f32 %v284, 1e-06
        %v287 = vrsqrt.pop %v285
        %v288 = vrsqrt.pop %v286
        %v289 = vmul.f32 %v274, %v287
        %v290 = vmul.f32 %v275, %v288
        %v291 = vld [vmem:[%s2] sm:$0x1]
        %v293 = vlaneseq
        %v294 = vshrl.u32 %v293, 7
        %v295 = vsub.s32 0, %v294
        %v296 = vrot.slane %v291, %v295
        %v298 = vmul.f32 %v296, %v289
        %v299 = vmul.f32 %v296, %v290
        %300 = vst [vmem:[%s240] sm:$0xff] %v298
        %301 = vst [vmem:[%s240 + $0x8] sm:$0xff] %v299
        %s302 = sand.u32 %s104, 1
        %s303 = scalar_lea.sflag [#allocation4], %s302
        %s304 = sand.u32 %s104, 1
        %s305 = smul.addr %s304, 16
        %s306 = scalar_lea.vmem [#allocation7], %s305
        // Predicated region
        $region41: #{tpu_custom_call.1} parent=31 // pred_check
          %p307 = pneg %p114
        $region42: #{tpu_custom_call.1} parent=31 // pred_check_branch
          %309 = sbr.rel (%p307) target = $region44
        $region43: #{tpu_custom_call.1} parent=31 // pred_region
          %s310 = smul.u32 2, %s23
          %s311 = ssub.s32 3, %s310
          %p312 = scmp.lt.s32.totalorder %s311, 2
          %s313 = scalar_select %p312, %s311, 2
          %s314 = smul.u32 128, %s313
          %s316 = ssub.s32 256, %s314
          %317 = vsyncadd %s303, %s316
          %p318 = scmp.ne.s32.totalorder 0, %s314
          %s319 = smul.addr %s310, 128
          %s320 = scalar_lea.hbm %s3, %s319
          %s321 = smul.u32 8, %s313
          %s322 = sshll.u32 %s306, 4
          %s323 = int_to_ptr.vmem [resolvable:$true] %s322
          %s324 = sshll.u32 %s321, 4
          %328 = dma.vmem_to_hbm [thread:$0]  (%p318), %s323, %s324, %s320, %s303, 128, 128, 8
        $region44: #{tpu_custom_call.1} parent=31 // pred_fallthru
          _
      $region32: #{tpu_custom_call.1} parent=5 // pred_fallthru
        _
      %p329 = scmp.le.s32.totalorder 2, %s18
      // Predicated region
      $region45: #{tpu_custom_call.1} parent=5 // pred_check
        %p330 = pneg %p329
      $region46: #{tpu_custom_call.1} parent=5 // pred_check_branch
        %332 = sbr.rel (%p330) target = $region48
      $region47: #{tpu_custom_call.1} parent=5 // pred_region
        %s333 = ssub.s32 %s18, 2
        // Predicated region
        $region49: #{tpu_custom_call.1} parent=47 // pred_check
          %p334 = pneg %p120
        $region50: #{tpu_custom_call.1} parent=47 // pred_check_branch
          %336 = sbr.rel (%p334) target = $region52
        $region51: #{tpu_custom_call.1} parent=47 // pred_region
          %s337 = sand.u32 %s105, 1
          %s338 = scalar_lea.sflag [#allocation4], %s337
          %s339 = sand.u32 %s105, 1
          %s340 = smul.addr %s339, 16
          %s341 = scalar_lea.vmem [#allocation7], %s340
          %342 = dma.done %s338, 256
        $region52: #{tpu_custom_call.1} parent=47 // pred_fallthru
          _
      $region48: #{tpu_custom_call.1} parent=5 // pred_fallthru
        _
    $region6: #{tpu_custom_call.1} parent=1 // loop_footer
      %s22 = sadd.s32 1, %s18
    $region7: #{tpu_custom_call.1} parent=1 // loop_footer_branch
      %17 = sbr.rel target = $region3
    $region8: #{tpu_custom_call.1} parent=1 // loop_exit
      _
    %343 = vsyncpa [#allocation3], 1
    %s344 = scalar_lea.sflag [#allocation3], 1
    %345 = vsyncpa %s344, 1
    %346 = vsyncpa [#allocation6], 1
    %s347 = scalar_lea.sflag [#allocation6], 1
    %348 = vsyncpa %s347, 1
    %349 = vsyncpa [#allocation4], 1
    %s350 = scalar_lea.sflag [#allocation4], 1
    %351 = vsyncpa %s350, 1

</llo_original>
